<compile_context>
chip_gen: v5e
topology: v5e:2x2
jax: 0.10.0
libtpu: 0.0.40
codegen_flags: <defaults>
</compile_context>

<pallas_src>
import functools

import jax
import jax.numpy as jnp
from jax.experimental import pallas as pl
from jax.experimental.pallas import tpu as pltpu

_LANE = 128
_SUBLANE = 8


def _round_up(v: int, m: int) -> int:
    return ((v + m - 1) // m) * m


def compute_pad_width(input_size, hidden_layer_sizes):
    """Common lane-dense padded width for X / hidden activations (mult. of 128)."""
    return _round_up(max([input_size] + list(hidden_layer_sizes)), _LANE)


# ---------------------------------------------------------------------------
# Kernel: one grid step = one batch tile; all K learners unrolled inside.
# ---------------------------------------------------------------------------
def _grownet_kernel(x_ref, w_ref, b_ref, wo_ref, bo_ref, o_ref, *,
                    num_hidden, num_learners):
    """
    x_ref : (TB, PADW)                      bf16  X zero-padded to PADW lanes
    w_ref : (K, num_hidden+1, PADW, PADW)   bf16  slot 0: W0 rows for X,
                                                  slot 1: W0 rows for prev pen,
                                                  slots 2..num_hidden: hidden layers
    b_ref : (K, num_hidden, 1, PADW)        f32   hidden-layer biases
    wo_ref: (K, PADW, 128)                  bf16  output weights (alpha folded in)
    bo_ref: (K, 1, 128)                     f32   output biases  (alpha folded in)
    o_ref : (TB, 128)                       f32   sum_k alpha_k * out_k (column 0)
    """
    x = x_ref[...]                                       # bf16
    acc = jnp.zeros(o_ref.shape, jnp.float32)
    pen = None                                           # penultimate of learner k-1
    for k in range(num_learners):
        # Layer 0:  cat([x, pen]) @ W0  ==  x @ W0x + pen @ W0p
        h = jnp.dot(x, w_ref[k, 0], preferred_element_type=jnp.float32)
        if k > 0:
            h = h + jnp.dot(pen, w_ref[k, 1], preferred_element_type=jnp.float32)
        h = jnp.maximum(h + b_ref[k, 0], 0.0)

        # Remaining hidden layers (num_hidden is small & compile-time).
        for l in range(1, num_hidden):
            h = jnp.dot(h.astype(jnp.bfloat16), w_ref[k, l + 1],
                        preferred_element_type=jnp.float32) + b_ref[k, l]
            h = jnp.maximum(h, 0.0)

        pen = h.astype(jnp.bfloat16)                     # consumed by learner k+1

        # Output layer (true out dim = 1, padded to 128 lanes; alpha pre-folded).
        acc = acc + jnp.dot(pen, wo_ref[k],
                            preferred_element_type=jnp.float32) + bo_ref[k]

    o_ref[...] = acc


# ---------------------------------------------------------------------------
# Wrapper
# ---------------------------------------------------------------------------
def grownet_forward_pallas(x, w_stacked, b_stacked, wo_stacked, bo_stacked, *,
                           num_hidden, batch_tile=None):
    """Fused GrowNet forward. Returns total_output of shape [batch, 1]."""
    batch, in_features = x.shape
    num_learners, depth_h, padw, _ = w_stacked.shape
    assert depth_h == num_hidden + 1

    bp8 = _round_up(batch, _SUBLANE)
    if batch_tile is None:
        if bp8 <= _SUBLANE:
            batch_tile = bp8
        else:
            # >= 2 tiles where possible (v7x megacore), tile <= 512, minimal padding.
            batch_tile = min(512, _round_up(pl.cdiv(bp8, 2), _SUBLANE))
    batch_tile = _round_up(batch_tile, _SUBLANE)
    bp = _round_up(bp8, batch_tile)

    # Resident-VMEM budget (weights are fetched once; blocks are double-buffered).
    weight_bytes = ((w_stacked.size + wo_stacked.size) * 2
                    + (b_stacked.size + bo_stacked.size) * 4)
    io_bytes = 2 * (batch_tile * padw * 2) + 2 * (batch_tile * _LANE * 4)
    needed = 2 * weight_bytes + io_bytes + (2 << 20)
    if 2 * weight_bytes > (40 << 20):
        # TODO(synk): stream weights per learner (extra "arbitrary" grid axis or
        # pltpu.emit_pipeline) when the stack no longer fits v7x's 64 MiB VMEM.
        raise ValueError("GrowNet weight stack too large to keep resident in VMEM")
    vmem_limit = int(min(48 << 20, max(32 << 20, needed)))

    # Zero-pad X into a lane-dense bf16 slab (padded rows/cols are exact: padded
    # weight rows/cols and biases are zero, ReLU(0) = 0).
    x_pad = jnp.zeros((bp, padw), jnp.bfloat16).at[:batch, :in_features].set(
        x.astype(jnp.bfloat16))

    kernel = functools.partial(_grownet_kernel, num_hidden=num_hidden,
                               num_learners=num_learners)
    out_slab = pl.pallas_call(
        kernel,
        out_shape=jax.ShapeDtypeStruct((bp, _LANE), jnp.float32),
        grid_spec=pltpu.PrefetchScalarGridSpec(
            num_scalar_prefetch=0,
            grid=(bp // batch_tile,),
            in_specs=[
                pl.BlockSpec((batch_tile, padw), lambda b: (b, 0)),
                # Constant block index across the batch axis -> DMA'd once total.
                pl.BlockSpec((num_learners, depth_h, padw, padw),
                             lambda b: (0, 0, 0, 0)),
                pl.BlockSpec((num_learners, num_hidden, 1, padw),
                             lambda b: (0, 0, 0, 0)),
                pl.BlockSpec((num_learners, padw, _LANE), lambda b: (0, 0, 0)),
                pl.BlockSpec((num_learners, 1, _LANE), lambda b: (0, 0, 0)),
            ],
            out_specs=pl.BlockSpec((batch_tile, _LANE), lambda b: (b, 0)),
        ),
        compiler_params=pltpu.CompilerParams(
            dimension_semantics=("parallel",),
            vmem_limit_bytes=vmem_limit),
    )(x_pad, w_stacked, b_stacked, wo_stacked, bo_stacked)

    return out_slab[:batch, :1]


# ---------------------------------------------------------------------------
# Parameter init (torch.nn.Linear-style) and one-time packing
# ---------------------------------------------------------------------------
def init_grownet_params(key, num_learners, input_size, hidden_layer_sizes):
    """Per-learner, per-layer (W [out,in], b [out]) with U(-1/sqrt(fan_in), ..) init."""
    pen = hidden_layer_sizes[-1]
    params = []
    for i in range(num_learners):
        in_size = input_size if i == 0 else input_size + pen
        layer_params = []
        cur = in_size
        for h in list(hidden_layer_sizes) + [1]:
            key, kw, kb = jax.random.split(key, 3)
            bound = 1.0 / (cur ** 0.5)
            w = jax.random.uniform(kw, (h, cur), jnp.float32, -bound, bound)
            b = jax.random.uniform(kb, (h,), jnp.float32, -bound, bound)
            layer_params.append((w, b))
            cur = h
        params.append(layer_params)
    return params


def pack_grownet_params(params, alphas, input_size, hidden_layer_sizes, padw):
    """Pre-transpose to [in,out], zero-pad, split layer-0, fold alpha into the
    output layer, cast weights to bf16, stack over learners."""
    num_hidden = len(hidden_layer_sizes)
    pen = hidden_layer_sizes[-1]
    w_all, b_all, wo_all, bo_all = [], [], [], []
    for k, layer_params in enumerate(params):
        ws, bs = [], []
        w0, b0 = layer_params[0]
        h0 = w0.shape[0]
        wx = jnp.zeros((padw, padw), jnp.float32).at[:input_size, :h0].set(
            w0[:, :input_size].T)
        wp = jnp.zeros((padw, padw), jnp.float32)
        if k > 0:
            wp = wp.at[:pen, :h0].set(w0[:, input_size:].T)
        ws += [wx, wp]
        bs.append(jnp.zeros((1, padw), jnp.float32).at[0, :h0].set(b0))
        for (w, b) in layer_params[1:-1]:
            out_d, in_d = w.shape
            ws.append(jnp.zeros((padw, padw), jnp.float32).at[:in_d, :out_d].set(w.T))
            bs.append(jnp.zeros((1, padw), jnp.float32).at[0, :out_d].set(b))
        w_out, b_out = layer_params[-1]                       # (1, pen), (1,)
        wo = jnp.zeros((padw, _LANE), jnp.float32).at[:pen, :1].set(
            alphas[k] * w_out.T)
        bo = jnp.zeros((1, _LANE), jnp.float32).at[0, :1].set(alphas[k] * b_out)
        w_all.append(jnp.stack(ws))         # [num_hidden+1, padw, padw]
        b_all.append(jnp.stack(bs))         # [num_hidden, 1, padw]
        wo_all.append(wo)
        bo_all.append(bo)
    w_stacked = jnp.stack(w_all).astype(jnp.bfloat16)    # [K, nh+1, padw, padw]
    b_stacked = jnp.stack(b_all)                         # [K, nh, 1, padw] f32
    wo_stacked = jnp.stack(wo_all).astype(jnp.bfloat16)  # [K, padw, 128]
    bo_stacked = jnp.stack(bo_all)                       # [K, 1, 128] f32
    assert w_stacked.shape[1] == num_hidden + 1
    return w_stacked, b_stacked, wo_stacked, bo_stacked


# ---------------------------------------------------------------------------
# References (mirror GrowNet.forward / Learner.forward)
# ---------------------------------------------------------------------------
def grownet_reference_f32(params, alphas, x):
    total = jnp.zeros((x.shape[0], 1), jnp.float32)
    prev_pen = None
    for i, layer_params in enumerate(params):
        inp = x if i == 0 else jnp.concatenate([x, prev_pen], axis=1)
        h = inp
        for (w, b) in layer_params[:-1]:
            h = jnp.maximum(h @ w.T + b, 0.0)
        w_out, b_out = layer_params[-1]
        total = total + alphas[i] * (h @ w_out.T + b_out)
        prev_pen = h
    return total


def grownet_reference_bf16(params, alphas, x):
    """Emulates the kernel's bf16-weight / bf16-dot-input, f32-accumulate math."""
    bf = jnp.bfloat16
    nfeat = x.shape[1]
    total = jnp.zeros((x.shape[0], 1), jnp.float32)
    x_bf = x.astype(bf)
    prev_pen_bf = None
    for i, layer_params in enumerate(params):
        h = None
        for j, (w, b) in enumerate(layer_params[:-1]):
            if j == 0:
                h = jnp.dot(x_bf, w[:, :nfeat].T.astype(bf),
                            preferred_element_type=jnp.float32)
                if i > 0:
                    h = h + jnp.dot(prev_pen_bf, w[:, nfeat:].T.astype(bf),
                                    preferred_element_type=jnp.float32)
            else:
                h = jnp.dot(h.astype(bf), w.T.astype(bf),
                            preferred_element_type=jnp.float32)
            h = jnp.maximum(h + b, 0.0)
        prev_pen_bf = h.astype(bf)
        w_out, b_out = layer_params[-1]
        out = jnp.dot(prev_pen_bf, (alphas[i] * w_out.T).astype(bf),
                      preferred_element_type=jnp.float32) + alphas[i] * b_out
        total = total + out
    return total


# ---------------------------------------------------------------------------
# Test harness
# ---------------------------------------------------------------------------
def _run_config(key, batch, num_features, hidden_layer_sizes, num_learners):
    k_x, k_p = jax.random.split(key)
    x = jax.random.normal(k_x, (batch, num_features), jnp.float32)
    params = init_grownet_params(k_p, num_learners, num_features, hidden_layer_sizes)
    # alphas are learnable (init 1.0 in the module); distinct values exercise the
    # per-learner scaling path (folded into the output weights at pack time).
    alphas = jnp.linspace(0.75, 1.25, num_learners).astype(jnp.float32)

    padw = compute_pad_width(num_features, hidden_layer_sizes)
    w_s, b_s, wo_s, bo_s = pack_grownet_params(params, alphas, num_features,
                                               hidden_layer_sizes, padw)

    fwd = jax.jit(functools.partial(grownet_forward_pallas,
                                    num_hidden=len(hidden_layer_sizes)))
    out = fwd(x, w_s, b_s, wo_s, bo_s)
    jax.block_until_ready(out)
    assert out.shape == (batch, 1)

    # Tight check vs a reference that emulates the kernel's bf16 casts exactly.
    ref_bf = grownet_reference_bf16(params, alphas, x)
    err_bf = float(jnp.max(jnp.abs(out - ref_bf)))
    assert err_bf < 5e-3, f"max abs err vs bf16 reference {err_bf}"

    # Looser sanity check vs the pure-f32 reference (bf16 weight quantization).
    ref_f32 = grownet_reference_f32(params, alphas, x)
    err_f32 = float(jnp.max(jnp.abs(out - ref_f32)))
    assert err_f32 < 1e-1, f"max abs err vs f32 reference {err_f32}"
    return out


if __name__ == "__main__":
    key = jax.random.PRNGKey(0)
    k1, k2 = jax.random.split(key)

    # Config 1: GrowNet defaults-ish — one hidden layer of 16, 4 weak learners.
    _run_config(k1, batch=8, num_features=32,
                hidden_layer_sizes=(16,), num_learners=4)

    # Config 2: deeper learners, unaligned feature count, more batch rows
    # (2 batch tiles -> exercises the "parallel" axis / v7x megacore path).
    _run_config(k2, batch=16, num_features=20,
                hidden_layer_sizes=(64, 32), num_learners=3)

    print("KERNEL_OK")
</pallas_src>

<mosaic_0001>
module attributes {stable_mosaic.version = 11 : i64} {
  func.func @_grownet_kernel(%arg0: i32, %arg1: memref<8x128xbf16, #tpu.memory_space<vmem>>, %arg2: memref<4x2x128x128xbf16, #tpu.memory_space<vmem>>, %arg3: memref<4x1x1x128xf32, #tpu.memory_space<vmem>>, %arg4: memref<4x128x128xbf16, #tpu.memory_space<vmem>>, %arg5: memref<4x1x128xf32, #tpu.memory_space<vmem>>, %arg6: memref<8x128xf32, #tpu.memory_space<vmem>>) attributes {dimension_semantics = [#tpu.dimension_semantics<parallel>], iteration_bounds = array<i64: 1>, scalar_prefetch = 0 : i64, scratch_operands = 0 : i64, tpu.core_type = #tpu.core_type<tc>, window_params = [{transform_indices = @transform_0, window_bounds = array<i64: 8, 128>}, {pipeline_mode = #tpu.pipeline_mode<synchronous>, transform_indices = @transform_1, window_bounds = array<i64: 4, 2, 128, 128>}, {pipeline_mode = #tpu.pipeline_mode<synchronous>, transform_indices = @transform_2, window_bounds = array<i64: 4, 1, 1, 128>}, {pipeline_mode = #tpu.pipeline_mode<synchronous>, transform_indices = @transform_3, window_bounds = array<i64: 4, 128, 128>}, {pipeline_mode = #tpu.pipeline_mode<synchronous>, transform_indices = @transform_4, window_bounds = array<i64: 4, 1, 128>}, {transform_indices = @transform_5, window_bounds = array<i64: 8, 128>}]} {
    %c0 = arith.constant 0 : index
    %c0_0 = arith.constant 0 : index
    %0 = vector.load %arg1[%c0, %c0_0] : memref<8x128xbf16, #tpu.memory_space<vmem>>, vector<8x128xbf16>
    %cst = arith.constant 0.000000e+00 : f32
    %1 = vector.broadcast %cst : f32 to vector<8x128xf32>
    %c0_1 = arith.constant 0 : index
    %c0_2 = arith.constant 0 : index
    %c0_3 = arith.constant 0 : index
    %c0_4 = arith.constant 0 : index
    %2 = vector.load %arg2[%c0_1, %c0_2, %c0_3, %c0_4] : memref<4x2x128x128xbf16, #tpu.memory_space<vmem>>, vector<1x1x128x128xbf16>
    %3 = vector.shape_cast %2 : vector<1x1x128x128xbf16> to vector<128x128xbf16>
    %cst_5 = arith.constant dense<0.000000e+00> : vector<8x128xf32>
    %4 = tpu.matmul %0, %3, %cst_5 {dimension_numbers = #tpu.dot_dimension_numbers<[1], [0], [0], [1], [0, 0, 1, 1], [], []>} : vector<8x128xbf16>, vector<128x128xbf16>, vector<8x128xf32> -> vector<8x128xf32>
    %c0_6 = arith.constant 0 : index
    %c0_7 = arith.constant 0 : index
    %c0_8 = arith.constant 0 : index
    %c0_9 = arith.constant 0 : index
    %5 = vector.load %arg3[%c0_6, %c0_7, %c0_8, %c0_9] : memref<4x1x1x128xf32, #tpu.memory_space<vmem>>, vector<1x1x1x128xf32>
    %6 = vector.shape_cast %5 : vector<1x1x1x128xf32> to vector<1x128xf32>
    %7 = vector.broadcast %6 : vector<1x128xf32> to vector<8x128xf32>
    %8 = arith.addf %4, %7 : vector<8x128xf32>
    %cst_10 = arith.constant 0.000000e+00 : f32
    %9 = vector.broadcast %cst_10 : f32 to vector<8x128xf32>
    %10 = arith.maximumf %8, %9 : vector<8x128xf32>
    %11 = arith.truncf %10 : vector<8x128xf32> to vector<8x128xbf16>
    %c0_11 = arith.constant 0 : index
    %c0_12 = arith.constant 0 : index
    %c0_13 = arith.constant 0 : index
    %12 = vector.load %arg4[%c0_11, %c0_12, %c0_13] : memref<4x128x128xbf16, #tpu.memory_space<vmem>>, vector<1x128x128xbf16>
    %13 = vector.shape_cast %12 : vector<1x128x128xbf16> to vector<128x128xbf16>
    %cst_14 = arith.constant dense<0.000000e+00> : vector<8x128xf32>
    %14 = tpu.matmul %11, %13, %cst_14 {dimension_numbers = #tpu.dot_dimension_numbers<[1], [0], [0], [1], [0, 0, 1, 1], [], []>} : vector<8x128xbf16>, vector<128x128xbf16>, vector<8x128xf32> -> vector<8x128xf32>
    %15 = arith.addf %1, %14 : vector<8x128xf32>
    %c0_15 = arith.constant 0 : index
    %c0_16 = arith.constant 0 : index
    %c0_17 = arith.constant 0 : index
    %16 = vector.load %arg5[%c0_15, %c0_16, %c0_17] : memref<4x1x128xf32, #tpu.memory_space<vmem>>, vector<1x1x128xf32>
    %17 = vector.shape_cast %16 : vector<1x1x128xf32> to vector<1x128xf32>
    %18 = vector.broadcast %17 : vector<1x128xf32> to vector<8x128xf32>
    %19 = arith.addf %15, %18 : vector<8x128xf32>
    %c1 = arith.constant 1 : index
    %c0_18 = arith.constant 0 : index
    %c0_19 = arith.constant 0 : index
    %c0_20 = arith.constant 0 : index
    %20 = vector.load %arg2[%c1, %c0_18, %c0_19, %c0_20] : memref<4x2x128x128xbf16, #tpu.memory_space<vmem>>, vector<1x1x128x128xbf16>
    %21 = vector.shape_cast %20 : vector<1x1x128x128xbf16> to vector<128x128xbf16>
    %cst_21 = arith.constant dense<0.000000e+00> : vector<8x128xf32>
    %22 = tpu.matmul %0, %21, %cst_21 {dimension_numbers = #tpu.dot_dimension_numbers<[1], [0], [0], [1], [0, 0, 1, 1], [], []>} : vector<8x128xbf16>, vector<128x128xbf16>, vector<8x128xf32> -> vector<8x128xf32>
    %c1_22 = arith.constant 1 : index
    %c1_23 = arith.constant 1 : index
    %c0_24 = arith.constant 0 : index
    %c0_25 = arith.constant 0 : index
    %23 = vector.load %arg2[%c1_22, %c1_23, %c0_24, %c0_25] : memref<4x2x128x128xbf16, #tpu.memory_space<vmem>>, vector<1x1x128x128xbf16>
    %24 = vector.shape_cast %23 : vector<1x1x128x128xbf16> to vector<128x128xbf16>
    %cst_26 = arith.constant dense<0.000000e+00> : vector<8x128xf32>
    %25 = tpu.matmul %11, %24, %cst_26 {dimension_numbers = #tpu.dot_dimension_numbers<[1], [0], [0], [1], [0, 0, 1, 1], [], []>} : vector<8x128xbf16>, vector<128x128xbf16>, vector<8x128xf32> -> vector<8x128xf32>
    %26 = arith.addf %22, %25 : vector<8x128xf32>
    %c1_27 = arith.constant 1 : index
    %c0_28 = arith.constant 0 : index
    %c0_29 = arith.constant 0 : index
    %c0_30 = arith.constant 0 : index
    %27 = vector.load %arg3[%c1_27, %c0_28, %c0_29, %c0_30] : memref<4x1x1x128xf32, #tpu.memory_space<vmem>>, vector<1x1x1x128xf32>
    %28 = vector.shape_cast %27 : vector<1x1x1x128xf32> to vector<1x128xf32>
    %29 = vector.broadcast %28 : vector<1x128xf32> to vector<8x128xf32>
    %30 = arith.addf %26, %29 : vector<8x128xf32>
    %cst_31 = arith.constant 0.000000e+00 : f32
    %31 = vector.broadcast %cst_31 : f32 to vector<8x128xf32>
    %32 = arith.maximumf %30, %31 : vector<8x128xf32>
    %33 = arith.truncf %32 : vector<8x128xf32> to vector<8x128xbf16>
    %c1_32 = arith.constant 1 : index
    %c0_33 = arith.constant 0 : index
    %c0_34 = arith.constant 0 : index
    %34 = vector.load %arg4[%c1_32, %c0_33, %c0_34] : memref<4x128x128xbf16, #tpu.memory_space<vmem>>, vector<1x128x128xbf16>
    %35 = vector.shape_cast %34 : vector<1x128x128xbf16> to vector<128x128xbf16>
    %cst_35 = arith.constant dense<0.000000e+00> : vector<8x128xf32>
    %36 = tpu.matmul %33, %35, %cst_35 {dimension_numbers = #tpu.dot_dimension_numbers<[1], [0], [0], [1], [0, 0, 1, 1], [], []>} : vector<8x128xbf16>, vector<128x128xbf16>, vector<8x128xf32> -> vector<8x128xf32>
    %37 = arith.addf %19, %36 : vector<8x128xf32>
    %c1_36 = arith.constant 1 : index
    %c0_37 = arith.constant 0 : index
    %c0_38 = arith.constant 0 : index
    %38 = vector.load %arg5[%c1_36, %c0_37, %c0_38] : memref<4x1x128xf32, #tpu.memory_space<vmem>>, vector<1x1x128xf32>
    %39 = vector.shape_cast %38 : vector<1x1x128xf32> to vector<1x128xf32>
    %40 = vector.broadcast %39 : vector<1x128xf32> to vector<8x128xf32>
    %41 = arith.addf %37, %40 : vector<8x128xf32>
    %c2 = arith.constant 2 : index
    %c0_39 = arith.constant 0 : index
    %c0_40 = arith.constant 0 : index
    %c0_41 = arith.constant 0 : index
    %42 = vector.load %arg2[%c2, %c0_39, %c0_40, %c0_41] : memref<4x2x128x128xbf16, #tpu.memory_space<vmem>>, vector<1x1x128x128xbf16>
    %43 = vector.shape_cast %42 : vector<1x1x128x128xbf16> to vector<128x128xbf16>
    %cst_42 = arith.constant dense<0.000000e+00> : vector<8x128xf32>
    %44 = tpu.matmul %0, %43, %cst_42 {dimension_numbers = #tpu.dot_dimension_numbers<[1], [0], [0], [1], [0, 0, 1, 1], [], []>} : vector<8x128xbf16>, vector<128x128xbf16>, vector<8x128xf32> -> vector<8x128xf32>
    %c2_43 = arith.constant 2 : index
    %c1_44 = arith.constant 1 : index
    %c0_45 = arith.constant 0 : index
    %c0_46 = arith.constant 0 : index
    %45 = vector.load %arg2[%c2_43, %c1_44, %c0_45, %c0_46] : memref<4x2x128x128xbf16, #tpu.memory_space<vmem>>, vector<1x1x128x128xbf16>
    %46 = vector.shape_cast %45 : vector<1x1x128x128xbf16> to vector<128x128xbf16>
    %cst_47 = arith.constant dense<0.000000e+00> : vector<8x128xf32>
    %47 = tpu.matmul %33, %46, %cst_47 {dimension_numbers = #tpu.dot_dimension_numbers<[1], [0], [0], [1], [0, 0, 1, 1], [], []>} : vector<8x128xbf16>, vector<128x128xbf16>, vector<8x128xf32> -> vector<8x128xf32>
    %48 = arith.addf %44, %47 : vector<8x128xf32>
    %c2_48 = arith.constant 2 : index
    %c0_49 = arith.constant 0 : index
    %c0_50 = arith.constant 0 : index
    %c0_51 = arith.constant 0 : index
    %49 = vector.load %arg3[%c2_48, %c0_49, %c0_50, %c0_51] : memref<4x1x1x128xf32, #tpu.memory_space<vmem>>, vector<1x1x1x128xf32>
    %50 = vector.shape_cast %49 : vector<1x1x1x128xf32> to vector<1x128xf32>
    %51 = vector.broadcast %50 : vector<1x128xf32> to vector<8x128xf32>
    %52 = arith.addf %48, %51 : vector<8x128xf32>
    %cst_52 = arith.constant 0.000000e+00 : f32
    %53 = vector.broadcast %cst_52 : f32 to vector<8x128xf32>
    %54 = arith.maximumf %52, %53 : vector<8x128xf32>
    %55 = arith.truncf %54 : vector<8x128xf32> to vector<8x128xbf16>
    %c2_53 = arith.constant 2 : index
    %c0_54 = arith.constant 0 : index
    %c0_55 = arith.constant 0 : index
    %56 = vector.load %arg4[%c2_53, %c0_54, %c0_55] : memref<4x128x128xbf16, #tpu.memory_space<vmem>>, vector<1x128x128xbf16>
    %57 = vector.shape_cast %56 : vector<1x128x128xbf16> to vector<128x128xbf16>
    %cst_56 = arith.constant dense<0.000000e+00> : vector<8x128xf32>
    %58 = tpu.matmul %55, %57, %cst_56 {dimension_numbers = #tpu.dot_dimension_numbers<[1], [0], [0], [1], [0, 0, 1, 1], [], []>} : vector<8x128xbf16>, vector<128x128xbf16>, vector<8x128xf32> -> vector<8x128xf32>
    %59 = arith.addf %41, %58 : vector<8x128xf32>
    %c2_57 = arith.constant 2 : index
    %c0_58 = arith.constant 0 : index
    %c0_59 = arith.constant 0 : index
    %60 = vector.load %arg5[%c2_57, %c0_58, %c0_59] : memref<4x1x128xf32, #tpu.memory_space<vmem>>, vector<1x1x128xf32>
    %61 = vector.shape_cast %60 : vector<1x1x128xf32> to vector<1x128xf32>
    %62 = vector.broadcast %61 : vector<1x128xf32> to vector<8x128xf32>
    %63 = arith.addf %59, %62 : vector<8x128xf32>
    %c3 = arith.constant 3 : index
    %c0_60 = arith.constant 0 : index
    %c0_61 = arith.constant 0 : index
    %c0_62 = arith.constant 0 : index
    %64 = vector.load %arg2[%c3, %c0_60, %c0_61, %c0_62] : memref<4x2x128x128xbf16, #tpu.memory_space<vmem>>, vector<1x1x128x128xbf16>
    %65 = vector.shape_cast %64 : vector<1x1x128x128xbf16> to vector<128x128xbf16>
    %cst_63 = arith.constant dense<0.000000e+00> : vector<8x128xf32>
    %66 = tpu.matmul %0, %65, %cst_63 {dimension_numbers = #tpu.dot_dimension_numbers<[1], [0], [0], [1], [0, 0, 1, 1], [], []>} : vector<8x128xbf16>, vector<128x128xbf16>, vector<8x128xf32> -> vector<8x128xf32>
    %c3_64 = arith.constant 3 : index
    %c1_65 = arith.constant 1 : index
    %c0_66 = arith.constant 0 : index
    %c0_67 = arith.constant 0 : index
    %67 = vector.load %arg2[%c3_64, %c1_65, %c0_66, %c0_67] : memref<4x2x128x128xbf16, #tpu.memory_space<vmem>>, vector<1x1x128x128xbf16>
    %68 = vector.shape_cast %67 : vector<1x1x128x128xbf16> to vector<128x128xbf16>
    %cst_68 = arith.constant dense<0.000000e+00> : vector<8x128xf32>
    %69 = tpu.matmul %55, %68, %cst_68 {dimension_numbers = #tpu.dot_dimension_numbers<[1], [0], [0], [1], [0, 0, 1, 1], [], []>} : vector<8x128xbf16>, vector<128x128xbf16>, vector<8x128xf32> -> vector<8x128xf32>
    %70 = arith.addf %66, %69 : vector<8x128xf32>
    %c3_69 = arith.constant 3 : index
    %c0_70 = arith.constant 0 : index
    %c0_71 = arith.constant 0 : index
    %c0_72 = arith.constant 0 : index
    %71 = vector.load %arg3[%c3_69, %c0_70, %c0_71, %c0_72] : memref<4x1x1x128xf32, #tpu.memory_space<vmem>>, vector<1x1x1x128xf32>
    %72 = vector.shape_cast %71 : vector<1x1x1x128xf32> to vector<1x128xf32>
    %73 = vector.broadcast %72 : vector<1x128xf32> to vector<8x128xf32>
    %74 = arith.addf %70, %73 : vector<8x128xf32>
    %cst_73 = arith.constant 0.000000e+00 : f32
    %75 = vector.broadcast %cst_73 : f32 to vector<8x128xf32>
    %76 = arith.maximumf %74, %75 : vector<8x128xf32>
    %77 = arith.truncf %76 : vector<8x128xf32> to vector<8x128xbf16>
    %c3_74 = arith.constant 3 : index
    %c0_75 = arith.constant 0 : index
    %c0_76 = arith.constant 0 : index
    %78 = vector.load %arg4[%c3_74, %c0_75, %c0_76] : memref<4x128x128xbf16, #tpu.memory_space<vmem>>, vector<1x128x128xbf16>
    %79 = vector.shape_cast %78 : vector<1x128x128xbf16> to vector<128x128xbf16>
    %cst_77 = arith.constant dense<0.000000e+00> : vector<8x128xf32>
    %80 = tpu.matmul %77, %79, %cst_77 {dimension_numbers = #tpu.dot_dimension_numbers<[1], [0], [0], [1], [0, 0, 1, 1], [], []>} : vector<8x128xbf16>, vector<128x128xbf16>, vector<8x128xf32> -> vector<8x128xf32>
    %81 = arith.addf %63, %80 : vector<8x128xf32>
    %c3_78 = arith.constant 3 : index
    %c0_79 = arith.constant 0 : index
    %c0_80 = arith.constant 0 : index
    %82 = vector.load %arg5[%c3_78, %c0_79, %c0_80] : memref<4x1x128xf32, #tpu.memory_space<vmem>>, vector<1x1x128xf32>
    %83 = vector.shape_cast %82 : vector<1x1x128xf32> to vector<1x128xf32>
    %84 = vector.broadcast %83 : vector<1x128xf32> to vector<8x128xf32>
    %85 = arith.addf %81, %84 : vector<8x128xf32>
    %c0_81 = arith.constant 0 : index
    %c0_82 = arith.constant 0 : index
    %86 = vector.load %arg6[%c0_81, %c0_82] : memref<8x128xf32, #tpu.memory_space<vmem>>, vector<8x128xf32>
    tpu.vector_store %arg6[%c0_81, %c0_82], %85 {strides = array<i32>} : memref<8x128xf32, #tpu.memory_space<vmem>>, vector<8x128xf32>,
    return
  }
  func.func @transform_0(%arg0: i32) -> (i32, i32) {
    %c0_i32 = arith.constant 0 : i32
    %c0_i32_0 = arith.constant 0 : i32
    return %arg0, %c0_i32 : i32, i32
  }
  func.func @transform_1(%arg0: i32) -> (i32, i32, i32, i32) {
    %c0_i32 = arith.constant 0 : i32
    %c0_i32_0 = arith.constant 0 : i32
    %c0_i32_1 = arith.constant 0 : i32
    %c0_i32_2 = arith.constant 0 : i32
    %c0_i32_3 = arith.constant 0 : i32
    return %c0_i32, %c0_i32_0, %c0_i32_1, %c0_i32_2 : i32, i32, i32, i32
  }
  func.func @transform_2(%arg0: i32) -> (i32, i32, i32, i32) {
    %c0_i32 = arith.constant 0 : i32
    %c0_i32_0 = arith.constant 0 : i32
    %c0_i32_1 = arith.constant 0 : i32
    %c0_i32_2 = arith.constant 0 : i32
    %c0_i32_3 = arith.constant 0 : i32
    return %c0_i32, %c0_i32_0, %c0_i32_1, %c0_i32_2 : i32, i32, i32, i32
  }
  func.func @transform_3(%arg0: i32) -> (i32, i32, i32) {
    %c0_i32 = arith.constant 0 : i32
    %c0_i32_0 = arith.constant 0 : i32
    %c0_i32_1 = arith.constant 0 : i32
    %c0_i32_2 = arith.constant 0 : i32
    return %c0_i32, %c0_i32_0, %c0_i32_1 : i32, i32, i32
  }
  func.func @transform_4(%arg0: i32) -> (i32, i32, i32) {
    %c0_i32 = arith.constant 0 : i32
    %c0_i32_0 = arith.constant 0 : i32
    %c0_i32_1 = arith.constant 0 : i32
    %c0_i32_2 = arith.constant 0 : i32
    return %c0_i32, %c0_i32_0, %c0_i32_1 : i32, i32, i32
  }
  func.func @transform_5(%arg0: i32) -> (i32, i32) {
    %c0_i32 = arith.constant 0 : i32
    %c0_i32_0 = arith.constant 0 : i32
    return %arg0, %c0_i32 : i32, i32
  }
}

</mosaic_0001>

<llo_original>
// kernel: grownet_forward_pallas.1
$region0: #{grownet_forward_pallas.1}
  #allocation0 [shape = 'u32[]', space=smem, size = 0x4, offset = 0x4, fixed_abs, tag = 'smem constant byte address 0x4 - core index']
  #allocation1 [shape = 'u32[72,128]{1,0:T(1,128)}', space=vmem, size = 0x9000, scoped, tag = 'internal scratch']
  %s0 = inlined_call_operand.vmem [shape: bf16[8,128], index: 0, kind: input, shape index: {}]
  %s1 = inlined_call_operand.hbm [shape: bf16[4,2,128,128], index: 1, kind: input, shape index: {}]
  %s2 = inlined_call_operand.vmem [shape: f32[4,1,1,128], index: 2, kind: input, shape index: {}]
  %s3 = inlined_call_operand.hbm [shape: bf16[4,128,128], index: 3, kind: input, shape index: {}]
  %s4 = inlined_call_operand.vmem [shape: f32[4,1,128], index: 4, kind: input, shape index: {}]
  %s5 = inlined_call_operand.vmem [shape: f32[8,128], index: 5, kind: output, shape index: {}]
  %s6 = sld [smem:[#allocation0]]
  $region38: #{grownet_forward_pallas.1} parent=0
    _
  %s8 = ssub.s32 1, %s6
  %s9 = scalar_select 0, %s8, %s6
  $region1: #{grownet_forward_pallas.1} parent=0
    #allocation2 [shape = 'u8[262144]{0}', space=vmem, size = 0x40000, scoped, tag = 'input window, operand 1, single buffered']
    #allocation3 [shape = 's32[1]{0}', space=sflag, size = 0x4, scoped, tag = 'scoped memory for grownet_forward_pallas.1']
    #allocation4 [shape = 'u8[131072]{0}', space=vmem, size = 0x20000, scoped, tag = 'input window, operand 3, single buffered']
    #allocation5 [shape = 's32[1]{0}', space=sflag, size = 0x4, scoped, tag = 'scoped memory for grownet_forward_pallas.1']
    %10 = vsyncpa [#allocation3], 0
    %11 = vsyncpa [#allocation5], 0
    // Predicated region
    $region2: #{grownet_forward_pallas.1} parent=1 // pred_check
      _
    $region3: #{grownet_forward_pallas.1} parent=1 // pred_check_branch
      %13 = sbr.rel (0) target = $region5
    $region4: #{grownet_forward_pallas.1} parent=1 // pred_region
      _
    $region5: #{grownet_forward_pallas.1} parent=1 // pred_fallthru
      _
    // Predicated region
    $region6: #{grownet_forward_pallas.1} parent=1 // pred_check
      _
    $region7: #{grownet_forward_pallas.1} parent=1 // pred_check_branch
      %15 = sbr.rel (0) target = $region9
    $region8: #{grownet_forward_pallas.1} parent=1 // pred_region
      %17 = vsyncadd [#allocation3], 0
      %s18 = sshll.u32 %s1, 4
      %s19 = int_to_ptr.hbm [resolvable:$true] %s18
      %s20 = sshll.u32 [#allocation2], 4
      %s21 = int_to_ptr.vmem [resolvable:$true] %s20
      %26 = dma.hbm_to_vmem [thread:$0]  %s19, 8192, %s21, [#allocation3], 64, 64, 4
    $region9: #{grownet_forward_pallas.1} parent=1 // pred_fallthru
      _
    // Predicated region
    $region10: #{grownet_forward_pallas.1} parent=1 // pred_check
      _
    $region11: #{grownet_forward_pallas.1} parent=1 // pred_check_branch
      %28 = sbr.rel (0) target = $region13
    $region12: #{grownet_forward_pallas.1} parent=1 // pred_region
      _
    $region13: #{grownet_forward_pallas.1} parent=1 // pred_fallthru
      _
    // Predicated region
    $region14: #{grownet_forward_pallas.1} parent=1 // pred_check
      _
    $region15: #{grownet_forward_pallas.1} parent=1 // pred_check_branch
      %30 = sbr.rel (0) target = $region17
    $region16: #{grownet_forward_pallas.1} parent=1 // pred_region
      %32 = vsyncadd [#allocation5], 0
      %s33 = sshll.u32 %s3, 4
      %s34 = int_to_ptr.hbm [resolvable:$true] %s33
      %s35 = sshll.u32 [#allocation4], 4
      %s36 = int_to_ptr.vmem [resolvable:$true] %s35
      %41 = dma.hbm_to_vmem [thread:$0]  %s34, 4096, %s36, [#allocation5], 64, 64, 4
    $region17: #{grownet_forward_pallas.1} parent=1 // pred_fallthru
      _
    // Predicated region
    $region18: #{grownet_forward_pallas.1} parent=1 // pred_check
      _
    $region19: #{grownet_forward_pallas.1} parent=1 // pred_check_branch
      %43 = sbr.rel (0) target = $region21
    $region20: #{grownet_forward_pallas.1} parent=1 // pred_region
      _
    $region21: #{grownet_forward_pallas.1} parent=1 // pred_fallthru
      _
    // Predicated region
    $region22: #{grownet_forward_pallas.1} parent=1 // pred_check
      _
    $region23: #{grownet_forward_pallas.1} parent=1 // pred_check_branch
      %45 = sbr.rel (0) target = $region25
    $region24: #{grownet_forward_pallas.1} parent=1 // pred_region
      %47 = dma.done [#allocation3], 8192
    $region25: #{grownet_forward_pallas.1} parent=1 // pred_fallthru
      _
    // Predicated region
    $region26: #{grownet_forward_pallas.1} parent=1 // pred_check
      _
    $region27: #{grownet_forward_pallas.1} parent=1 // pred_check_branch
      %49 = sbr.rel (0) target = $region29
    $region28: #{grownet_forward_pallas.1} parent=1 // pred_region
      %51 = dma.done [#allocation5], 4096
    $region29: #{grownet_forward_pallas.1} parent=1 // pred_fallthru
      _
    %v52 = vld [vmem:[%s0] sm:$0xf]
    %v53 = vld [vmem:[#allocation2] sm:$0xf]
    %v54 = vld [vmem:[#allocation2 + $0x4] sm:$0xf]
    %v55 = vld [vmem:[#allocation2 + $0x8] sm:$0xf]
    %v56 = vld [vmem:[#allocation2 + $0xc] sm:$0xf]
    %v57 = vld [vmem:[#allocation2 + $0x10] sm:$0xf]
    %v58 = vld [vmem:[#allocation2 + $0x14] sm:$0xf]
    %v59 = vld [vmem:[#allocation2 + $0x18] sm:$0xf]
    %v60 = vld [vmem:[#allocation2 + $0x1c] sm:$0xf]
    %v61 = vld [vmem:[#allocation2 + $0x20] sm:$0xf]
    %v62 = vld [vmem:[#allocation2 + $0x24] sm:$0xf]
    %v63 = vld [vmem:[#allocation2 + $0x28] sm:$0xf]
    %v64 = vld [vmem:[#allocation2 + $0x2c] sm:$0xf]
    %v65 = vld [vmem:[#allocation2 + $0x30] sm:$0xf]
    %v66 = vld [vmem:[#allocation2 + $0x34] sm:$0xf]
    %v67 = vld [vmem:[#allocation2 + $0x38] sm:$0xf]
    %v68 = vld [vmem:[#allocation2 + $0x3c] sm:$0xf]
    %v69 = vld [vmem:[%s2] sm:$0x1]
    %v71 = vperm.slane %v69, 0
    %v89 = vunpack.c.l.b16 %v53
    %v90 = vunpack.c.l.b16 %v54
    %v91 = vunpack.c.l.b16 %v55
    %v92 = vunpack.c.l.b16 %v56
    %v93 = vunpack.c.l.b16 %v57
    %v94 = vunpack.c.l.b16 %v58
    %v95 = vunpack.c.l.b16 %v59
    %v96 = vunpack.c.l.b16 %v60
    %v97 = vunpack.c.l.b16 %v61
    %v98 = vunpack.c.l.b16 %v62
    %v99 = vunpack.c.l.b16 %v63
    %v100 = vunpack.c.l.b16 %v64
    %v101 = vunpack.c.l.b16 %v65
    %v102 = vunpack.c.l.b16 %v66
    %v103 = vunpack.c.l.b16 %v67
    %v104 = vunpack.c.l.b16 %v68
    %v105 = vpack.c.b16 %v90, %v89
    %v106 = vpack.c.b16 %v92, %v91
    %v107 = vpack.c.b16 %v94, %v93
    %v108 = vpack.c.b16 %v96, %v95
    %v109 = vpack.c.b16 %v98, %v97
    %v110 = vpack.c.b16 %v100, %v99
    %v111 = vpack.c.b16 %v102, %v101
    %v112 = vpack.c.b16 %v104, %v103
    %121 = vmatpush.bf16.msra.mxu0 %v112
    %122 = vmatpush.bf16.msra.mxu0 %v111
    %123 = vmatpush.bf16.msra.mxu0 %v110
    %124 = vmatpush.bf16.msra.mxu0 %v109
    %125 = vmatpush.bf16.msra.mxu0 %v108
    %126 = vmatpush.bf16.msra.mxu0 %v107
    %127 = vmatpush.bf16.msra.mxu0 %v106
    %128 = vmatpush.bf16.msra.mxu0 %v105
    %129 = vmatmul.bf16.gmra.mxu0 %v52
    %v130 = vpop.f32.mrf.mxu0
    %v131 = vadd.f32 %v71, %v130
    %v132 = vpop.f32.mrf.mxu0
    %133 = vdwg.mxu0
    %v134 = vmax.f32 %v131, 0.0
    %v135 = vpack.c.bf16 %v134, %v134
    %v136 = vld [vmem:[#allocation4] sm:$0xf]
    %v137 = vld [vmem:[#allocation4 + $0x4] sm:$0xf]
    %v138 = vld [vmem:[#allocation4 + $0x8] sm:$0xf]
    %v139 = vld [vmem:[#allocation4 + $0xc] sm:$0xf]
    %v140 = vld [vmem:[#allocation4 + $0x10] sm:$0xf]
    %v141 = vld [vmem:[#allocation4 + $0x14] sm:$0xf]
    %v142 = vld [vmem:[#allocation4 + $0x18] sm:$0xf]
    %v143 = vld [vmem:[#allocation4 + $0x1c] sm:$0xf]
    %v144 = vld [vmem:[#allocation4 + $0x20] sm:$0xf]
    %v145 = vld [vmem:[#allocation4 + $0x24] sm:$0xf]
    %v146 = vld [vmem:[#allocation4 + $0x28] sm:$0xf]
    %v147 = vld [vmem:[#allocation4 + $0x2c] sm:$0xf]
    %v148 = vld [vmem:[#allocation4 + $0x30] sm:$0xf]
    %v149 = vld [vmem:[#allocation4 + $0x34] sm:$0xf]
    %v150 = vld [vmem:[#allocation4 + $0x38] sm:$0xf]
    %v151 = vld [vmem:[#allocation4 + $0x3c] sm:$0xf]
    %v152 = vld [vmem:[%s4] sm:$0x1]
    %v154 = vperm.slane %v152, 0
    %v172 = vunpack.c.l.b16 %v136
    %v173 = vunpack.c.l.b16 %v137
    %v174 = vunpack.c.l.b16 %v138
    %v175 = vunpack.c.l.b16 %v139
    %v176 = vunpack.c.l.b16 %v140
    %v177 = vunpack.c.l.b16 %v141
    %v178 = vunpack.c.l.b16 %v142
    %v179 = vunpack.c.l.b16 %v143
    %v180 = vunpack.c.l.b16 %v144
    %v181 = vunpack.c.l.b16 %v145
    %v182 = vunpack.c.l.b16 %v146
    %v183 = vunpack.c.l.b16 %v147
    %v184 = vunpack.c.l.b16 %v148
    %v185 = vunpack.c.l.b16 %v149
    %v186 = vunpack.c.l.b16 %v150
    %v187 = vunpack.c.l.b16 %v151
    %v188 = vpack.c.b16 %v173, %v172
    %v189 = vpack.c.b16 %v175, %v174
    %v190 = vpack.c.b16 %v177, %v176
    %v191 = vpack.c.b16 %v179, %v178
    %v192 = vpack.c.b16 %v181, %v180
    %v193 = vpack.c.b16 %v183, %v182
    %v194 = vpack.c.b16 %v185, %v184
    %v195 = vpack.c.b16 %v187, %v186
    %204 = vmatpush.bf16.msra.mxu0 %v195
    %205 = vmatpush.bf16.msra.mxu0 %v194
    %206 = vmatpush.bf16.msra.mxu0 %v193
    %207 = vmatpush.bf16.msra.mxu0 %v192
    %208 = vmatpush.bf16.msra.mxu0 %v191
    %209 = vmatpush.bf16.msra.mxu0 %v190
    %210 = vmatpush.bf16.msra.mxu0 %v189
    %211 = vmatpush.bf16.msra.mxu0 %v188
    %212 = vmatmul.bf16.gmra.mxu0 %v135
    %v213 = vpop.f32.mrf.mxu0
    %v214 = vadd.f32 %v154, %v213
    %v215 = vpop.f32.mrf.mxu0
    %216 = vdwg.mxu0
    %s217 = scalar_lea.vmem [#allocation2], 128
    %v218 = vld [vmem:[%s217] sm:$0xf]
    %v219 = vld [vmem:[%s217 + $0x4] sm:$0xf]
    %v220 = vld [vmem:[%s217 + $0x8] sm:$0xf]
    %v221 = vld [vmem:[%s217 + $0xc] sm:$0xf]
    %v222 = vld [vmem:[%s217 + $0x10] sm:$0xf]
    %v223 = vld [vmem:[%s217 + $0x14] sm:$0xf]
    %v224 = vld [vmem:[%s217 + $0x18] sm:$0xf]
    %v225 = vld [vmem:[%s217 + $0x1c] sm:$0xf]
    %v226 = vld [vmem:[%s217 + $0x20] sm:$0xf]
    %v227 = vld [vmem:[%s217 + $0x24] sm:$0xf]
    %v228 = vld [vmem:[%s217 + $0x28] sm:$0xf]
    %v229 = vld [vmem:[%s217 + $0x2c] sm:$0xf]
    %v230 = vld [vmem:[%s217 + $0x30] sm:$0xf]
    %v231 = vld [vmem:[%s217 + $0x34] sm:$0xf]
    %v232 = vld [vmem:[%s217 + $0x38] sm:$0xf]
    %v233 = vld [vmem:[%s217 + $0x3c] sm:$0xf]
    %s234 = scalar_lea.vmem [#allocation2], 192
    %v235 = vld [vmem:[%s234] sm:$0xf]
    %v236 = vld [vmem:[%s234 + $0x4] sm:$0xf]
    %v237 = vld [vmem:[%s234 + $0x8] sm:$0xf]
    %v238 = vld [vmem:[%s234 + $0xc] sm:$0xf]
    %v239 = vld [vmem:[%s234 + $0x10] sm:$0xf]
    %v240 = vld [vmem:[%s234 + $0x14] sm:$0xf]
    %v241 = vld [vmem:[%s234 + $0x18] sm:$0xf]
    %v242 = vld [vmem:[%s234 + $0x1c] sm:$0xf]
    %v243 = vld [vmem:[%s234 + $0x20] sm:$0xf]
    %v244 = vld [vmem:[%s234 + $0x24] sm:$0xf]
    %v245 = vld [vmem:[%s234 + $0x28] sm:$0xf]
    %v246 = vld [vmem:[%s234 + $0x2c] sm:$0xf]
    %v247 = vld [vmem:[%s234 + $0x30] sm:$0xf]
    %v248 = vld [vmem:[%s234 + $0x34] sm:$0xf]
    %v249 = vld [vmem:[%s234 + $0x38] sm:$0xf]
    %v250 = vld [vmem:[%s234 + $0x3c] sm:$0xf]
    %v267 = vunpack.c.l.b16 %v235
    %v268 = vunpack.c.l.b16 %v236
    %v269 = vunpack.c.l.b16 %v237
    %v270 = vunpack.c.l.b16 %v238
    %v271 = vunpack.c.l.b16 %v239
    %v272 = vunpack.c.l.b16 %v240
    %v273 = vunpack.c.l.b16 %v241
    %v274 = vunpack.c.l.b16 %v242
    %v275 = vunpack.c.l.b16 %v243
    %v276 = vunpack.c.l.b16 %v244
    %v277 = vunpack.c.l.b16 %v245
    %v278 = vunpack.c.l.b16 %v246
    %v279 = vunpack.c.l.b16 %v247
    %v280 = vunpack.c.l.b16 %v248
    %v281 = vunpack.c.l.b16 %v249
    %v282 = vunpack.c.l.b16 %v250
    %v283 = vpack.c.b16 %v268, %v267
    %v284 = vpack.c.b16 %v270, %v269
    %v285 = vpack.c.b16 %v272, %v271
    %v286 = vpack.c.b16 %v274, %v273
    %v287 = vpack.c.b16 %v276, %v275
    %v288 = vpack.c.b16 %v278, %v277
    %v289 = vpack.c.b16 %v280, %v279
    %v290 = vpack.c.b16 %v282, %v281
    %299 = vmatpush.bf16.msra.mxu0 %v290
    %300 = vmatpush.bf16.msra.mxu0 %v289
    %301 = vmatpush.bf16.msra.mxu0 %v288
    %302 = vmatpush.bf16.msra.mxu0 %v287
    %303 = vmatpush.bf16.msra.mxu0 %v286
    %304 = vmatpush.bf16.msra.mxu0 %v285
    %305 = vmatpush.bf16.msra.mxu0 %v284
    %306 = vmatpush.bf16.msra.mxu0 %v283
    %307 = vmatmul.bf16.gmra.mxu0 %v135
    %v308 = vpop.f32.mrf.mxu0
    %v309 = vadd.f32 0.0, %v308
    %v310 = vpop.f32.mrf.mxu0
    %311 = vdwg.mxu0
    %v328 = vunpack.c.l.b16 %v218
    %v329 = vunpack.c.l.b16 %v219
    %v330 = vunpack.c.l.b16 %v220
    %v331 = vunpack.c.l.b16 %v221
    %v332 = vunpack.c.l.b16 %v222
    %v333 = vunpack.c.l.b16 %v223
    %v334 = vunpack.c.l.b16 %v224
    %v335 = vunpack.c.l.b16 %v225
    %v336 = vunpack.c.l.b16 %v226
    %v337 = vunpack.c.l.b16 %v227
    %v338 = vunpack.c.l.b16 %v228
    %v339 = vunpack.c.l.b16 %v229
    %v340 = vunpack.c.l.b16 %v230
    %v341 = vunpack.c.l.b16 %v231
    %v342 = vunpack.c.l.b16 %v232
    %v343 = vunpack.c.l.b16 %v233
    %v344 = vpack.c.b16 %v329, %v328
    %v345 = vpack.c.b16 %v331, %v330
    %v346 = vpack.c.b16 %v333, %v332
    %v347 = vpack.c.b16 %v335, %v334
    %v348 = vpack.c.b16 %v337, %v336
    %v349 = vpack.c.b16 %v339, %v338
    %v350 = vpack.c.b16 %v341, %v340
    %v351 = vpack.c.b16 %v343, %v342
    %360 = vmatpush.bf16.msra.mxu0 %v351
    %361 = vmatpush.bf16.msra.mxu0 %v350
    %362 = vmatpush.bf16.msra.mxu0 %v349
    %363 = vmatpush.bf16.msra.mxu0 %v348
    %364 = vmatpush.bf16.msra.mxu0 %v347
    %365 = vmatpush.bf16.msra.mxu0 %v346
    %366 = vmatpush.bf16.msra.mxu0 %v345
    %367 = vmatpush.bf16.msra.mxu0 %v344
    %368 = vmatmul.bf16.gmra.mxu0 %v52
    %v369 = vpop.f32.mrf.mxu0
    %v370 = vadd.f32 %v309, %v369
    %v371 = vpop.f32.mrf.mxu0
    %372 = vdwg.mxu0
    %s373 = scalar_lea.vmem %s2, 1
    %v374 = vld [vmem:[%s373] sm:$0x1]
    %v376 = vperm.slane %v374, 0
    %v378 = vadd.f32 %v370, %v376
    %v379 = vmax.f32 %v378, 0.0
    %v380 = vpack.c.bf16 %v379, %v379
    %s381 = scalar_lea.vmem [#allocation4], 64
    %v382 = vld [vmem:[%s381] sm:$0xf]
    %v383 = vld [vmem:[%s381 + $0x4] sm:$0xf]
    %v384 = vld [vmem:[%s381 + $0x8] sm:$0xf]
    %v385 = vld [vmem:[%s381 + $0xc] sm:$0xf]
    %v386 = vld [vmem:[%s381 + $0x10] sm:$0xf]
    %v387 = vld [vmem:[%s381 + $0x14] sm:$0xf]
    %v388 = vld [vmem:[%s381 + $0x18] sm:$0xf]
    %v389 = vld [vmem:[%s381 + $0x1c] sm:$0xf]
    %v390 = vld [vmem:[%s381 + $0x20] sm:$0xf]
    %v391 = vld [vmem:[%s381 + $0x24] sm:$0xf]
    %v392 = vld [vmem:[%s381 + $0x28] sm:$0xf]
    %v393 = vld [vmem:[%s381 + $0x2c] sm:$0xf]
    %v394 = vld [vmem:[%s381 + $0x30] sm:$0xf]
    %v395 = vld [vmem:[%s381 + $0x34] sm:$0xf]
    %v396 = vld [vmem:[%s381 + $0x38] sm:$0xf]
    %v397 = vld [vmem:[%s381 + $0x3c] sm:$0xf]
    %v414 = vunpack.c.l.b16 %v382
    %v415 = vunpack.c.l.b16 %v383
    %v416 = vunpack.c.l.b16 %v384
    %v417 = vunpack.c.l.b16 %v385
    %v418 = vunpack.c.l.b16 %v386
    %v419 = vunpack.c.l.b16 %v387
    %v420 = vunpack.c.l.b16 %v388
    %v421 = vunpack.c.l.b16 %v389
    %v422 = vunpack.c.l.b16 %v390
    %v423 = vunpack.c.l.b16 %v391
    %v424 = vunpack.c.l.b16 %v392
    %v425 = vunpack.c.l.b16 %v393
    %v426 = vunpack.c.l.b16 %v394
    %v427 = vunpack.c.l.b16 %v395
    %v428 = vunpack.c.l.b16 %v396
    %v429 = vunpack.c.l.b16 %v397
    %v430 = vpack.c.b16 %v415, %v414
    %v431 = vpack.c.b16 %v417, %v416
    %v432 = vpack.c.b16 %v419, %v418
    %v433 = vpack.c.b16 %v421, %v420
    %v434 = vpack.c.b16 %v423, %v422
    %v435 = vpack.c.b16 %v425, %v424
    %v436 = vpack.c.b16 %v427, %v426
    %v437 = vpack.c.b16 %v429, %v428
    %446 = vmatpush.bf16.msra.mxu0 %v437
    %447 = vmatpush.bf16.msra.mxu0 %v436
    %448 = vmatpush.bf16.msra.mxu0 %v435
    %449 = vmatpush.bf16.msra.mxu0 %v434
    %450 = vmatpush.bf16.msra.mxu0 %v433
    %451 = vmatpush.bf16.msra.mxu0 %v432
    %452 = vmatpush.bf16.msra.mxu0 %v431
    %453 = vmatpush.bf16.msra.mxu0 %v430
    %454 = vmatmul.bf16.gmra.mxu0 %v380
    %v455 = vpop.f32.mrf.mxu0
    %v456 = vadd.f32 0.0, %v455
    %v457 = vpop.f32.mrf.mxu0
    %458 = vdwg.mxu0
    %v459 = vadd.f32 %v214, %v456
    %s460 = scalar_lea.vmem %s4, 1
    %v461 = vld [vmem:[%s460] sm:$0x1]
    %v463 = vperm.slane %v461, 0
    %v465 = vadd.f32 %v459, %v463
    %s466 = scalar_lea.vmem [#allocation2], 256
    %v467 = vld [vmem:[%s466] sm:$0xf]
    %v468 = vld [vmem:[%s466 + $0x4] sm:$0xf]
    %v469 = vld [vmem:[%s466 + $0x8] sm:$0xf]
    %v470 = vld [vmem:[%s466 + $0xc] sm:$0xf]
    %v471 = vld [vmem:[%s466 + $0x10] sm:$0xf]
    %v472 = vld [vmem:[%s466 + $0x14] sm:$0xf]
    %v473 = vld [vmem:[%s466 + $0x18] sm:$0xf]
    %v474 = vld [vmem:[%s466 + $0x1c] sm:$0xf]
    %v475 = vld [vmem:[%s466 + $0x20] sm:$0xf]
    %v476 = vld [vmem:[%s466 + $0x24] sm:$0xf]
    %v477 = vld [vmem:[%s466 + $0x28] sm:$0xf]
    %v478 = vld [vmem:[%s466 + $0x2c] sm:$0xf]
    %v479 = vld [vmem:[%s466 + $0x30] sm:$0xf]
    %v480 = vld [vmem:[%s466 + $0x34] sm:$0xf]
    %v481 = vld [vmem:[%s466 + $0x38] sm:$0xf]
    %v482 = vld [vmem:[%s466 + $0x3c] sm:$0xf]
    %s483 = scalar_lea.vmem [#allocation2], 320
    %v484 = vld [vmem:[%s483] sm:$0xf]
    %v485 = vld [vmem:[%s483 + $0x4] sm:$0xf]
    %v486 = vld [vmem:[%s483 + $0x8] sm:$0xf]
    %v487 = vld [vmem:[%s483 + $0xc] sm:$0xf]
    %v488 = vld [vmem:[%s483 + $0x10] sm:$0xf]
    %v489 = vld [vmem:[%s483 + $0x14] sm:$0xf]
    %v490 = vld [vmem:[%s483 + $0x18] sm:$0xf]
    %v491 = vld [vmem:[%s483 + $0x1c] sm:$0xf]
    %v492 = vld [vmem:[%s483 + $0x20] sm:$0xf]
    %v493 = vld [vmem:[%s483 + $0x24] sm:$0xf]
    %v494 = vld [vmem:[%s483 + $0x28] sm:$0xf]
    %v495 = vld [vmem:[%s483 + $0x2c] sm:$0xf]
    %v496 = vld [vmem:[%s483 + $0x30] sm:$0xf]
    %v497 = vld [vmem:[%s483 + $0x34] sm:$0xf]
    %v498 = vld [vmem:[%s483 + $0x38] sm:$0xf]
    %v499 = vld [vmem:[%s483 + $0x3c] sm:$0xf]
    %v516 = vunpack.c.l.b16 %v484
    %v517 = vunpack.c.l.b16 %v485
    %v518 = vunpack.c.l.b16 %v486
    %v519 = vunpack.c.l.b16 %v487
    %v520 = vunpack.c.l.b16 %v488
    %v521 = vunpack.c.l.b16 %v489
    %v522 = vunpack.c.l.b16 %v490
    %v523 = vunpack.c.l.b16 %v491
    %v524 = vunpack.c.l.b16 %v492
    %v525 = vunpack.c.l.b16 %v493
    %v526 = vunpack.c.l.b16 %v494
    %v527 = vunpack.c.l.b16 %v495
    %v528 = vunpack.c.l.b16 %v496
    %v529 = vunpack.c.l.b16 %v497
    %v530 = vunpack.c.l.b16 %v498
    %v531 = vunpack.c.l.b16 %v499
    %v532 = vpack.c.b16 %v517, %v516
    %v533 = vpack.c.b16 %v519, %v518
    %v534 = vpack.c.b16 %v521, %v520
    %v535 = vpack.c.b16 %v523, %v522
    %v536 = vpack.c.b16 %v525, %v524
    %v537 = vpack.c.b16 %v527, %v526
    %v538 = vpack.c.b16 %v529, %v528
    %v539 = vpack.c.b16 %v531, %v530
    %548 = vmatpush.bf16.msra.mxu0 %v539
    %549 = vmatpush.bf16.msra.mxu0 %v538
    %550 = vmatpush.bf16.msra.mxu0 %v537
    %551 = vmatpush.bf16.msra.mxu0 %v536
    %552 = vmatpush.bf16.msra.mxu0 %v535
    %553 = vmatpush.bf16.msra.mxu0 %v534
    %554 = vmatpush.bf16.msra.mxu0 %v533
    %555 = vmatpush.bf16.msra.mxu0 %v532
    %556 = vmatmul.bf16.gmra.mxu0 %v380
    %v557 = vpop.f32.mrf.mxu0
    %v558 = vadd.f32 0.0, %v557
    %v559 = vpop.f32.mrf.mxu0
    %560 = vdwg.mxu0
    %v577 = vunpack.c.l.b16 %v467
    %v578 = vunpack.c.l.b16 %v468
    %v579 = vunpack.c.l.b16 %v469
    %v580 = vunpack.c.l.b16 %v470
    %v581 = vunpack.c.l.b16 %v471
    %v582 = vunpack.c.l.b16 %v472
    %v583 = vunpack.c.l.b16 %v473
    %v584 = vunpack.c.l.b16 %v474
    %v585 = vunpack.c.l.b16 %v475
    %v586 = vunpack.c.l.b16 %v476
    %v587 = vunpack.c.l.b16 %v477
    %v588 = vunpack.c.l.b16 %v478
    %v589 = vunpack.c.l.b16 %v479
    %v590 = vunpack.c.l.b16 %v480
    %v591 = vunpack.c.l.b16 %v481
    %v592 = vunpack.c.l.b16 %v482
    %v593 = vpack.c.b16 %v578, %v577
    %v594 = vpack.c.b16 %v580, %v579
    %v595 = vpack.c.b16 %v582, %v581
    %v596 = vpack.c.b16 %v584, %v583
    %v597 = vpack.c.b16 %v586, %v585
    %v598 = vpack.c.b16 %v588, %v587
    %v599 = vpack.c.b16 %v590, %v589
    %v600 = vpack.c.b16 %v592, %v591
    %609 = vmatpush.bf16.msra.mxu0 %v600
    %610 = vmatpush.bf16.msra.mxu0 %v599
    %611 = vmatpush.bf16.msra.mxu0 %v598
    %612 = vmatpush.bf16.msra.mxu0 %v597
    %613 = vmatpush.bf16.msra.mxu0 %v596
    %614 = vmatpush.bf16.msra.mxu0 %v595
    %615 = vmatpush.bf16.msra.mxu0 %v594
    %616 = vmatpush.bf16.msra.mxu0 %v593
    %617 = vmatmul.bf16.gmra.mxu0 %v52
    %v618 = vpop.f32.mrf.mxu0
    %v619 = vadd.f32 %v558, %v618
    %v620 = vpop.f32.mrf.mxu0
    %621 = vdwg.mxu0
    %s622 = scalar_lea.vmem %s2, 2
    %v623 = vld [vmem:[%s622] sm:$0x1]
    %v625 = vperm.slane %v623, 0
    %v627 = vadd.f32 %v619, %v625
    %v628 = vmax.f32 %v627, 0.0
    %v629 = vpack.c.bf16 %v628, %v628
    %s630 = scalar_lea.vmem [#allocation4], 128
    %v631 = vld [vmem:[%s630] sm:$0xf]
    %v632 = vld [vmem:[%s630 + $0x4] sm:$0xf]
    %v633 = vld [vmem:[%s630 + $0x8] sm:$0xf]
    %v634 = vld [vmem:[%s630 + $0xc] sm:$0xf]
    %v635 = vld [vmem:[%s630 + $0x10] sm:$0xf]
    %v636 = vld [vmem:[%s630 + $0x14] sm:$0xf]
    %v637 = vld [vmem:[%s630 + $0x18] sm:$0xf]
    %v638 = vld [vmem:[%s630 + $0x1c] sm:$0xf]
    %v639 = vld [vmem:[%s630 + $0x20] sm:$0xf]
    %v640 = vld [vmem:[%s630 + $0x24] sm:$0xf]
    %v641 = vld [vmem:[%s630 + $0x28] sm:$0xf]
    %v642 = vld [vmem:[%s630 + $0x2c] sm:$0xf]
    %v643 = vld [vmem:[%s630 + $0x30] sm:$0xf]
    %v644 = vld [vmem:[%s630 + $0x34] sm:$0xf]
    %v645 = vld [vmem:[%s630 + $0x38] sm:$0xf]
    %v646 = vld [vmem:[%s630 + $0x3c] sm:$0xf]
    %v663 = vunpack.c.l.b16 %v631
    %v664 = vunpack.c.l.b16 %v632
    %v665 = vunpack.c.l.b16 %v633
    %v666 = vunpack.c.l.b16 %v634
    %v667 = vunpack.c.l.b16 %v635
    %v668 = vunpack.c.l.b16 %v636
    %v669 = vunpack.c.l.b16 %v637
    %v670 = vunpack.c.l.b16 %v638
    %v671 = vunpack.c.l.b16 %v639
    %v672 = vunpack.c.l.b16 %v640
    %v673 = vunpack.c.l.b16 %v641
    %v674 = vunpack.c.l.b16 %v642
    %v675 = vunpack.c.l.b16 %v643
    %v676 = vunpack.c.l.b16 %v644
    %v677 = vunpack.c.l.b16 %v645
    %v678 = vunpack.c.l.b16 %v646
    %v679 = vpack.c.b16 %v664, %v663
    %v680 = vpack.c.b16 %v666, %v665
    %v681 = vpack.c.b16 %v668, %v667
    %v682 = vpack.c.b16 %v670, %v669
    %v683 = vpack.c.b16 %v672, %v671
    %v684 = vpack.c.b16 %v674, %v673
    %v685 = vpack.c.b16 %v676, %v675
    %v686 = vpack.c.b16 %v678, %v677
    %695 = vmatpush.bf16.msra.mxu0 %v686
    %696 = vmatpush.bf16.msra.mxu0 %v685
    %697 = vmatpush.bf16.msra.mxu0 %v684
    %698 = vmatpush.bf16.msra.mxu0 %v683
    %699 = vmatpush.bf16.msra.mxu0 %v682
    %700 = vmatpush.bf16.msra.mxu0 %v681
    %701 = vmatpush.bf16.msra.mxu0 %v680
    %702 = vmatpush.bf16.msra.mxu0 %v679
    %703 = vmatmul.bf16.gmra.mxu0 %v629
    %v704 = vpop.f32.mrf.mxu0
    %v705 = vadd.f32 0.0, %v704
    %v706 = vpop.f32.mrf.mxu0
    %707 = vdwg.mxu0
    %v708 = vadd.f32 %v465, %v705
    %s709 = scalar_lea.vmem %s4, 2
    %v710 = vld [vmem:[%s709] sm:$0x1]
    %v712 = vperm.slane %v710, 0
    %v714 = vadd.f32 %v708, %v712
    %s715 = scalar_lea.vmem [#allocation2], 384
    %v716 = vld [vmem:[%s715] sm:$0xf]
    %v717 = vld [vmem:[%s715 + $0x4] sm:$0xf]
    %v718 = vld [vmem:[%s715 + $0x8] sm:$0xf]
    %v719 = vld [vmem:[%s715 + $0xc] sm:$0xf]
    %v720 = vld [vmem:[%s715 + $0x10] sm:$0xf]
    %v721 = vld [vmem:[%s715 + $0x14] sm:$0xf]
    %v722 = vld [vmem:[%s715 + $0x18] sm:$0xf]
    %v723 = vld [vmem:[%s715 + $0x1c] sm:$0xf]
    %v724 = vld [vmem:[%s715 + $0x20] sm:$0xf]
    %v725 = vld [vmem:[%s715 + $0x24] sm:$0xf]
    %v726 = vld [vmem:[%s715 + $0x28] sm:$0xf]
    %v727 = vld [vmem:[%s715 + $0x2c] sm:$0xf]
    %v728 = vld [vmem:[%s715 + $0x30] sm:$0xf]
    %v729 = vld [vmem:[%s715 + $0x34] sm:$0xf]
    %v730 = vld [vmem:[%s715 + $0x38] sm:$0xf]
    %v731 = vld [vmem:[%s715 + $0x3c] sm:$0xf]
    %s732 = scalar_lea.vmem [#allocation2], 448
    %v733 = vld [vmem:[%s732] sm:$0xf]
    %v734 = vld [vmem:[%s732 + $0x4] sm:$0xf]
    %v735 = vld [vmem:[%s732 + $0x8] sm:$0xf]
    %v736 = vld [vmem:[%s732 + $0xc] sm:$0xf]
    %v737 = vld [vmem:[%s732 + $0x10] sm:$0xf]
    %v738 = vld [vmem:[%s732 + $0x14] sm:$0xf]
    %v739 = vld [vmem:[%s732 + $0x18] sm:$0xf]
    %v740 = vld [vmem:[%s732 + $0x1c] sm:$0xf]
    %v741 = vld [vmem:[%s732 + $0x20] sm:$0xf]
    %v742 = vld [vmem:[%s732 + $0x24] sm:$0xf]
    %v743 = vld [vmem:[%s732 + $0x28] sm:$0xf]
    %v744 = vld [vmem:[%s732 + $0x2c] sm:$0xf]
    %v745 = vld [vmem:[%s732 + $0x30] sm:$0xf]
    %v746 = vld [vmem:[%s732 + $0x34] sm:$0xf]
    %v747 = vld [vmem:[%s732 + $0x38] sm:$0xf]
    %v748 = vld [vmem:[%s732 + $0x3c] sm:$0xf]
    %v765 = vunpack.c.l.b16 %v733
    %v766 = vunpack.c.l.b16 %v734
    %v767 = vunpack.c.l.b16 %v735
    %v768 = vunpack.c.l.b16 %v736
    %v769 = vunpack.c.l.b16 %v737
    %v770 = vunpack.c.l.b16 %v738
    %v771 = vunpack.c.l.b16 %v739
    %v772 = vunpack.c.l.b16 %v740
    %v773 = vunpack.c.l.b16 %v741
    %v774 = vunpack.c.l.b16 %v742
    %v775 = vunpack.c.l.b16 %v743
    %v776 = vunpack.c.l.b16 %v744
    %v777 = vunpack.c.l.b16 %v745
    %v778 = vunpack.c.l.b16 %v746
    %v779 = vunpack.c.l.b16 %v747
    %v780 = vunpack.c.l.b16 %v748
    %v781 = vpack.c.b16 %v766, %v765
    %v782 = vpack.c.b16 %v768, %v767
    %v783 = vpack.c.b16 %v770, %v769
    %v784 = vpack.c.b16 %v772, %v771
    %v785 = vpack.c.b16 %v774, %v773
    %v786 = vpack.c.b16 %v776, %v775
    %v787 = vpack.c.b16 %v778, %v777
    %v788 = vpack.c.b16 %v780, %v779
    %797 = vmatpush.bf16.msra.mxu0 %v788
    %798 = vmatpush.bf16.msra.mxu0 %v787
    %799 = vmatpush.bf16.msra.mxu0 %v786
    %800 = vmatpush.bf16.msra.mxu0 %v785
    %801 = vmatpush.bf16.msra.mxu0 %v784
    %802 = vmatpush.bf16.msra.mxu0 %v783
    %803 = vmatpush.bf16.msra.mxu0 %v782
    %804 = vmatpush.bf16.msra.mxu0 %v781
    %805 = vmatmul.bf16.gmra.mxu0 %v629
    %v806 = vpop.f32.mrf.mxu0
    %v807 = vadd.f32 0.0, %v806
    %v808 = vpop.f32.mrf.mxu0
    %809 = vdwg.mxu0
    %v826 = vunpack.c.l.b16 %v716
    %v827 = vunpack.c.l.b16 %v717
    %v828 = vunpack.c.l.b16 %v718
    %v829 = vunpack.c.l.b16 %v719
    %v830 = vunpack.c.l.b16 %v720
    %v831 = vunpack.c.l.b16 %v721
    %v832 = vunpack.c.l.b16 %v722
    %v833 = vunpack.c.l.b16 %v723
    %v834 = vunpack.c.l.b16 %v724
    %v835 = vunpack.c.l.b16 %v725
    %v836 = vunpack.c.l.b16 %v726
    %v837 = vunpack.c.l.b16 %v727
    %v838 = vunpack.c.l.b16 %v728
    %v839 = vunpack.c.l.b16 %v729
    %v840 = vunpack.c.l.b16 %v730
    %v841 = vunpack.c.l.b16 %v731
    %v842 = vpack.c.b16 %v827, %v826
    %v843 = vpack.c.b16 %v829, %v828
    %v844 = vpack.c.b16 %v831, %v830
    %v845 = vpack.c.b16 %v833, %v832
    %v846 = vpack.c.b16 %v835, %v834
    %v847 = vpack.c.b16 %v837, %v836
    %v848 = vpack.c.b16 %v839, %v838
    %v849 = vpack.c.b16 %v841, %v840
    %858 = vmatpush.bf16.msra.mxu0 %v849
    %859 = vmatpush.bf16.msra.mxu0 %v848
    %860 = vmatpush.bf16.msra.mxu0 %v847
    %861 = vmatpush.bf16.msra.mxu0 %v846
    %862 = vmatpush.bf16.msra.mxu0 %v845
    %863 = vmatpush.bf16.msra.mxu0 %v844
    %864 = vmatpush.bf16.msra.mxu0 %v843
    %865 = vmatpush.bf16.msra.mxu0 %v842
    %866 = vmatmul.bf16.gmra.mxu0 %v52
    %v867 = vpop.f32.mrf.mxu0
    %v868 = vadd.f32 %v807, %v867
    %v869 = vpop.f32.mrf.mxu0
    %870 = vdwg.mxu0
    %s871 = scalar_lea.vmem %s2, 3
    %v872 = vld [vmem:[%s871] sm:$0x1]
    %v874 = vperm.slane %v872, 0
    %v876 = vadd.f32 %v868, %v874
    %v877 = vmax.f32 %v876, 0.0
    %v878 = vpack.c.bf16 %v877, %v877
    %s879 = scalar_lea.vmem [#allocation4], 192
    %v880 = vld [vmem:[%s879] sm:$0xf]
    %v881 = vld [vmem:[%s879 + $0x4] sm:$0xf]
    %v882 = vld [vmem:[%s879 + $0x8] sm:$0xf]
    %v883 = vld [vmem:[%s879 + $0xc] sm:$0xf]
    %v884 = vld [vmem:[%s879 + $0x10] sm:$0xf]
    %v885 = vld [vmem:[%s879 + $0x14] sm:$0xf]
    %v886 = vld [vmem:[%s879 + $0x18] sm:$0xf]
    %v887 = vld [vmem:[%s879 + $0x1c] sm:$0xf]
    %v888 = vld [vmem:[%s879 + $0x20] sm:$0xf]
    %v889 = vld [vmem:[%s879 + $0x24] sm:$0xf]
    %v890 = vld [vmem:[%s879 + $0x28] sm:$0xf]
    %v891 = vld [vmem:[%s879 + $0x2c] sm:$0xf]
    %v892 = vld [vmem:[%s879 + $0x30] sm:$0xf]
    %v893 = vld [vmem:[%s879 + $0x34] sm:$0xf]
    %v894 = vld [vmem:[%s879 + $0x38] sm:$0xf]
    %v895 = vld [vmem:[%s879 + $0x3c] sm:$0xf]
    %v912 = vunpack.c.l.b16 %v880
    %v913 = vunpack.c.l.b16 %v881
    %v914 = vunpack.c.l.b16 %v882
    %v915 = vunpack.c.l.b16 %v883
    %v916 = vunpack.c.l.b16 %v884
    %v917 = vunpack.c.l.b16 %v885
    %v918 = vunpack.c.l.b16 %v886
    %v919 = vunpack.c.l.b16 %v887
    %v920 = vunpack.c.l.b16 %v888
    %v921 = vunpack.c.l.b16 %v889
    %v922 = vunpack.c.l.b16 %v890
    %v923 = vunpack.c.l.b16 %v891
    %v924 = vunpack.c.l.b16 %v892
    %v925 = vunpack.c.l.b16 %v893
    %v926 = vunpack.c.l.b16 %v894
    %v927 = vunpack.c.l.b16 %v895
    %v928 = vpack.c.b16 %v913, %v912
    %v929 = vpack.c.b16 %v915, %v914
    %v930 = vpack.c.b16 %v917, %v916
    %v931 = vpack.c.b16 %v919, %v918
    %v932 = vpack.c.b16 %v921, %v920
    %v933 = vpack.c.b16 %v923, %v922
    %v934 = vpack.c.b16 %v925, %v924
    %v935 = vpack.c.b16 %v927, %v926
    %944 = vmatpush.bf16.msra.mxu0 %v935
    %945 = vmatpush.bf16.msra.mxu0 %v934
    %946 = vmatpush.bf16.msra.mxu0 %v933
    %947 = vmatpush.bf16.msra.mxu0 %v932
    %948 = vmatpush.bf16.msra.mxu0 %v931
    %949 = vmatpush.bf16.msra.mxu0 %v930
    %950 = vmatpush.bf16.msra.mxu0 %v929
    %951 = vmatpush.bf16.msra.mxu0 %v928
    %952 = vmatmul.bf16.gmra.mxu0 %v878
    %v953 = vpop.f32.mrf.mxu0
    %v954 = vadd.f32 0.0, %v953
    %v955 = vpop.f32.mrf.mxu0
    %956 = vdwg.mxu0
    %v957 = vadd.f32 %v714, %v954
    %s958 = scalar_lea.vmem %s4, 3
    %v959 = vld [vmem:[%s958] sm:$0x1]
    %v961 = vperm.slane %v959, 0
    %v963 = vadd.f32 %v957, %v961
    %964 = vst [vmem:[%s5] sm:$0xff] %v963
    // Predicated region
    $region30: #{grownet_forward_pallas.1} parent=1 // pred_check
      _
    $region31: #{grownet_forward_pallas.1} parent=1 // pred_check_branch
      %966 = sbr.rel (0) target = $region33
    $region32: #{grownet_forward_pallas.1} parent=1 // pred_region
      _
    $region33: #{grownet_forward_pallas.1} parent=1 // pred_fallthru
      _
    // Predicated region
    $region34: #{grownet_forward_pallas.1} parent=1 // pred_check
      _
    $region35: #{grownet_forward_pallas.1} parent=1 // pred_check_branch
      %968 = sbr.rel (0) target = $region37
    $region36: #{grownet_forward_pallas.1} parent=1 // pred_region
      _
    $region37: #{grownet_forward_pallas.1} parent=1 // pred_fallthru
      _
    %969 = vsyncpa [#allocation3], 1
    %970 = vsyncpa [#allocation5], 1

</llo_original>
